<compile_context>
chip_gen: v5e
topology: v5e:2x2
jax: 0.10.0
libtpu: 0.0.40
codegen_flags: <defaults>
</compile_context>

<pallas_src>
import functools
import math

import jax
import jax.numpy as jnp
from jax import lax
from jax.experimental import pallas as pl
from jax.experimental.pallas import tpu as pltpu

LANES = 128
MAX_TILE_ROWS = 8192   # (8192, 128) f32 block = 4 MiB per input per pipeline buffer
ROW_ALIGN = 16         # sublane alignment safe for f32 (8) and bf16 (16) blocks


def _focal_loss_kernel(x_ref, t_ref, out_ref, acc_ref, *,
                       tile_rows, tiles_per_chunk, total_tiles,
                       rows_valid, gamma, needs_row_mask):
    c = pl.program_id(0)           # "parallel" chunk axis (2 TCs on v7x / megacore)
    ti = pl.program_id(1)          # "arbitrary" streaming/reduction axis
    tile_idx = c * tiles_per_chunk + ti

    @pl.when(ti == 0)
    def _init():
        acc_ref[...] = jnp.zeros_like(acc_ref)

    x = x_ref[...].astype(jnp.float32)
    t = t_ref[...].astype(jnp.float32)

    # Numerically stable BCEWithLogits (reduction='none'):
    #   bce = max(x, 0) - x*t + log1p(exp(-|x|))
    bce = jnp.maximum(x, 0.0) - x * t + jnp.log1p(jnp.exp(-jnp.abs(x)))

    g = float(gamma)
    if g == 0.0:
        f = bce                                    # (1 - pt) ** 0 == 1
    else:
        q = 1.0 - jnp.exp(-bce)                    # 1 - pt
        if g.is_integer() and g > 0:
            # Integer gamma: square-and-multiply -> plain VPU multiplies, no EUP pow.
            e = int(g)
            mod = None
            base = q
            while True:
                if e & 1:
                    mod = base if mod is None else mod * base
                e >>= 1
                if not e:
                    break
                base = base * base
        else:
            # Non-integer gamma: exp(g * log(q)) with a clamp so q == 0 stays finite.
            mod = jnp.exp(g * jnp.log(jnp.maximum(q, jnp.float32(1e-37))))
        f = mod * bce

    def _accumulate(vals):
        # Leading-axis partial reduce (tile_rows, 128) -> (1, 128) into the tiny acc.
        acc_ref[...] += jnp.sum(vals, axis=0, keepdims=True)

    if needs_row_mask:
        # Bulk tiles: unmasked, pure VPU accumulate.
        @pl.when(tile_idx < total_tiles - 1)
        def _bulk():
            _accumulate(f)

        # Last data tile: mask the rows past the end of the (rows, 128) slab.
        # Dead trailing tiles (tile_idx >= total_tiles, odd tile count split over
        # two chunks) accumulate nothing.
        @pl.when(tile_idx == total_tiles - 1)
        def _last():
            row = tile_idx * tile_rows + lax.broadcasted_iota(jnp.int32, f.shape, 0)
            _accumulate(jnp.where(row < rows_valid, f, 0.0))
    else:
        @pl.when(tile_idx < total_tiles)
        def _bulk():
            _accumulate(f)

    # Per-chunk finalize: reduce 128 lanes, one scalar SMEM store.
    @pl.when(ti == tiles_per_chunk - 1)
    def _finalize():
        out_ref[0, 0] = jnp.sum(acc_ref[...])


def _tensorcores_per_device():
    """How many TensorCores a 'parallel' grid axis can be sharded over on this chip."""
    try:
        kind = jax.devices()[0].device_kind.lower()
    except Exception:
        return 1
    if "7" in kind:                        # TPU v7x: 2 TensorCores per chip
        return 2
    if "v4" in kind or "v5p" in kind:      # megacore generations
        return 2
    return 1                               # v5e / v6e: single TensorCore


def _focal_terms_f32(x, t, gamma):
    x = x.astype(jnp.float32)
    t = t.astype(jnp.float32)
    bce = jnp.maximum(x, 0.0) - x * t + jnp.log1p(jnp.exp(-jnp.abs(x)))
    pt = jnp.exp(-bce)
    return (1.0 - pt) ** gamma * bce


def binary_focal_loss(inputs, targets, *, alpha=1.0, gamma=2.0, size_average=True,
                      max_tile_rows=MAX_TILE_ROWS, num_chunks=None):
    """Pallas TPU implementation of BinaryFocalLoss.forward (inputs are logits)."""
    inputs = jnp.asarray(inputs)
    targets = jnp.asarray(targets)
    assert inputs.shape == targets.shape
    n = math.prod(inputs.shape)
    if n == 0:
        # Torch semantics: mean of empty -> nan, sum of empty -> 0.
        return jnp.float32(float("nan")) if size_average else jnp.float32(0.0)

    x_flat = jnp.ravel(inputs)     # free bitcast for contiguous inputs
    t_flat = jnp.ravel(targets)

    lane_rows = n // LANES
    n_main = lane_rows * LANES

    total = jnp.float32(0.0)

    if lane_rows > 0:
        if n_main == n:
            # Common case: free bitcast reshape, zero extra HBM traffic.
            x2d = x_flat.reshape(lane_rows, LANES)
            t2d = t_flat.reshape(lane_rows, LANES)
        else:
            # n % 128 != 0: one-time compaction of the lane-aligned prefix
            # (still no full-array pad; the <128-element tail is handled below).
            x2d = lax.slice(x_flat, (0,), (n_main,)).reshape(lane_rows, LANES)
            t2d = lax.slice(t_flat, (0,), (n_main,)).reshape(lane_rows, LANES)

        tile_cap = max(ROW_ALIGN, (int(max_tile_rows) // ROW_ALIGN) * ROW_ALIGN)
        tile_rows = min(tile_cap, lane_rows)
        total_tiles = -(-lane_rows // tile_rows)

        chunks = _tensorcores_per_device() if num_chunks is None else int(num_chunks)
        chunks = max(1, min(chunks, total_tiles))
        tiles_per_chunk = -(-total_tiles // chunks)

        needs_row_mask = (lane_rows % tile_rows) != 0

        kernel = functools.partial(
            _focal_loss_kernel,
            tile_rows=tile_rows,
            tiles_per_chunk=tiles_per_chunk,
            total_tiles=total_tiles,
            rows_valid=lane_rows,
            gamma=float(gamma),
            needs_row_mask=needs_row_mask)

        def in_map(c, t):
            # Clamp so a trailing dead tile re-reads the last data block instead of
            # going out of bounds; pl.when gates ensure it accumulates nothing.
            return (jnp.minimum(c * tiles_per_chunk + t, total_tiles - 1), 0)

        # 2 inputs x 2 pipeline buffers, in native dtype; raise the scoped-VMEM limit
        # so big tiles also fit v5e's 16 MiB default (stays far below physical VMEM).
        inflight = 2 * tile_rows * LANES * (x2d.dtype.itemsize + t2d.dtype.itemsize)
        vmem_limit = int(min(100 << 20, max(32 << 20, inflight + (8 << 20))))

        partials = pl.pallas_call(
            kernel,
            out_shape=jax.ShapeDtypeStruct((chunks, 1), jnp.float32),
            grid_spec=pltpu.PrefetchScalarGridSpec(
                num_scalar_prefetch=0,
                grid=(chunks, tiles_per_chunk),
                in_specs=[
                    pl.BlockSpec((tile_rows, LANES), in_map),
                    pl.BlockSpec((tile_rows, LANES), in_map),
                ],
                out_specs=pl.BlockSpec((1, 1), lambda c, t: (c, 0),
                                       memory_space=pltpu.SMEM),
                scratch_shapes=[pltpu.VMEM((1, LANES), jnp.float32)],
            ),
            compiler_params=pltpu.CompilerParams(
                dimension_semantics=("parallel", "arbitrary"),
                vmem_limit_bytes=vmem_limit),
        )(x2d, t2d)

        total = total + jnp.sum(partials)

    if n_main < n:
        # Ragged tail (< 128 elements): tiny plain-jnp reduction added to the partials.
        x_tail = lax.slice(x_flat, (n_main,), (n,))
        t_tail = lax.slice(t_flat, (n_main,), (n,))
        total = total + jnp.sum(_focal_terms_f32(x_tail, t_tail, float(gamma)))

    total = total * jnp.float32(alpha)
    if size_average:
        total = total / jnp.float32(n)
    return total


def _reference(inputs, targets, alpha=1.0, gamma=2.0, size_average=True):
    f_loss = alpha * _focal_terms_f32(inputs, targets, gamma)
    return jnp.mean(f_loss) if size_average else jnp.sum(f_loss)


if __name__ == "__main__":
    key = jax.random.PRNGKey(0)
    ks = jax.random.split(key, 8)

    def check(got, ref, rtol=1e-5, atol=1e-6):
        assert jnp.allclose(got, ref, rtol=rtol, atol=atol), (got, ref)

    # 1) Module defaults (alpha=1, gamma=2, mean) on small NCHW logits; n % 128 == 0,
    #    single full tile, zero-copy path.
    x1 = jax.random.normal(ks[0], (2, 4, 16, 16), dtype=jnp.float32)
    t1 = (jax.random.uniform(ks[1], (2, 4, 16, 16)) > 0.5).astype(jnp.float32)
    check(jax.block_until_ready(binary_focal_loss(x1, t1)), _reference(x1, t1))

    # 1b) Non-integer gamma (exp/log modulator path inside the kernel).
    check(jax.block_until_ready(binary_focal_loss(x1, t1, gamma=1.5)),
          _reference(x1, t1, gamma=1.5), rtol=1e-4, atol=1e-5)

    # 2) Multi-tile with a partial last tile (row mask), forced 2-chunk split with an
    #    odd tile count (clamped dead tile), sum reduction.
    x2 = jax.random.normal(ks[2], (2, 4, 40, 32), dtype=jnp.float32)   # 10240 elems = 80 rows
    t2 = (jax.random.uniform(ks[3], (2, 4, 40, 32)) > 0.5).astype(jnp.float32)
    got2 = jax.block_until_ready(
        binary_focal_loss(x2, t2, size_average=False, max_tile_rows=32, num_chunks=2))
    check(got2, _reference(x2, t2, size_average=False), rtol=1e-5, atol=1e-2)

    # 3) Ragged n (not a multiple of 128): lane-aligned prefix through the kernel plus
    #    jnp tail; alpha != 1, gamma = 3, mean.
    x3 = jax.random.normal(ks[4], (2, 1, 85, 62), dtype=jnp.float32)   # 10540 elems
    t3 = (jax.random.uniform(ks[5], (2, 1, 85, 62)) > 0.5).astype(jnp.float32)
    check(jax.block_until_ready(binary_focal_loss(x3, t3, alpha=0.75, gamma=3.0)),
          _reference(x3, t3, alpha=0.75, gamma=3.0))
    #    Same data with small tiles -> partial last block over a non-8-multiple row count.
    check(jax.block_until_ready(
              binary_focal_loss(x3, t3, alpha=0.75, gamma=3.0, max_tile_rows=32)),
          _reference(x3, t3, alpha=0.75, gamma=3.0))

    # 4) bf16 inputs, auto chunking / default tiles.
    x4 = jax.random.normal(ks[6], (2, 4, 32, 32), dtype=jnp.bfloat16)
    t4 = (jax.random.uniform(ks[7], (2, 4, 32, 32)) > 0.5).astype(jnp.bfloat16)
    check(jax.block_until_ready(binary_focal_loss(x4, t4)), _reference(x4, t4),
          rtol=5e-3, atol=5e-3)

    print("KERNEL_OK")
</pallas_src>

<mosaic_0001>
module attributes {stable_mosaic.version = 11 : i64} {
  func.func @_focal_loss_kernel(%arg0: i32, %arg1: i32, %arg2: memref<16x128xf32, #tpu.memory_space<vmem>>, %arg3: memref<16x128xf32, #tpu.memory_space<vmem>>, %arg4: memref<1x1xf32, #tpu.memory_space<smem>>, %arg5: memref<1x128xf32, #tpu.memory_space<vmem>>) attributes {dimension_semantics = [#tpu.dimension_semantics<parallel>, #tpu.dimension_semantics<arbitrary>], iteration_bounds = array<i64: 1, 1>, scalar_prefetch = 0 : i64, scratch_operands = 1 : i64, tpu.core_type = #tpu.core_type<tc>, window_params = [{transform_indices = @transform_0, window_bounds = array<i64: 16, 128>}, {transform_indices = @transform_1, window_bounds = array<i64: 16, 128>}, {transform_indices = @transform_2, window_bounds = array<i64: 1, 1>}]} {
    %c1_i32 = arith.constant 1 : i32
    %0 = arith.muli %arg0, %c1_i32 : i32
    %1 = arith.addi %0, %arg1 : i32
    %c0_i32 = arith.constant 0 : i32
    %2 = arith.cmpi eq, %arg1, %c0_i32 : i32
    %3 = arith.extui %2 : i1 to i32
    %c0_i32_0 = arith.constant 0 : i32
    %4 = arith.cmpi ne, %3, %c0_i32_0 : i32
    scf.if %4 {
      %cst_11 = arith.constant 0.000000e+00 : f32
      %30 = vector.broadcast %cst_11 : f32 to vector<1x128xf32>
      %c0_12 = arith.constant 0 : index
      %c0_13 = arith.constant 0 : index
      %31 = vector.load %arg5[%c0_12, %c0_13] : memref<1x128xf32, #tpu.memory_space<vmem>>, vector<1x128xf32>
      tpu.vector_store %arg5[%c0_12, %c0_13], %30 {strides = array<i32>} : memref<1x128xf32, #tpu.memory_space<vmem>>, vector<1x128xf32>,
    } else {
    }
    %c0 = arith.constant 0 : index
    %c0_1 = arith.constant 0 : index
    %5 = vector.load %arg2[%c0, %c0_1] : memref<16x128xf32, #tpu.memory_space<vmem>>, vector<16x128xf32>
    %c0_2 = arith.constant 0 : index
    %c0_3 = arith.constant 0 : index
    %6 = vector.load %arg3[%c0_2, %c0_3] : memref<16x128xf32, #tpu.memory_space<vmem>>, vector<16x128xf32>
    %cst = arith.constant 0.000000e+00 : f32
    %7 = vector.broadcast %cst : f32 to vector<16x128xf32>
    %8 = arith.maximumf %5, %7 : vector<16x128xf32>
    %9 = arith.mulf %5, %6 : vector<16x128xf32>
    %10 = arith.subf %8, %9 : vector<16x128xf32>
    %11 = math.absf %5 : vector<16x128xf32>
    %cst_4 = arith.constant 0.000000e+00 : f32
    %12 = vector.broadcast %cst_4 : f32 to vector<16x128xf32>
    %13 = arith.subf %12, %11 : vector<16x128xf32>
    %14 = math.exp %13 : vector<16x128xf32>
    %15 = math.log1p %14 : vector<16x128xf32>
    %16 = arith.addf %10, %15 : vector<16x128xf32>
    %cst_5 = arith.constant 0.000000e+00 : f32
    %17 = vector.broadcast %cst_5 : f32 to vector<16x128xf32>
    %18 = arith.subf %17, %16 : vector<16x128xf32>
    %19 = math.exp %18 : vector<16x128xf32>
    %cst_6 = arith.constant 1.000000e+00 : f32
    %20 = vector.broadcast %cst_6 : f32 to vector<16x128xf32>
    %21 = arith.subf %20, %19 : vector<16x128xf32>
    %22 = arith.mulf %21, %21 : vector<16x128xf32>
    %23 = arith.mulf %22, %16 : vector<16x128xf32>
    %c1_i32_7 = arith.constant 1 : i32
    %24 = arith.cmpi slt, %1, %c1_i32_7 : i32
    %25 = arith.extui %24 : i1 to i32
    %c0_i32_8 = arith.constant 0 : i32
    %26 = arith.cmpi ne, %25, %c0_i32_8 : i32
    scf.if %26 {
      %c0_11 = arith.constant 0 : index
      %c0_12 = arith.constant 0 : index
      %30 = vector.load %arg5[%c0_11, %c0_12] : memref<1x128xf32, #tpu.memory_space<vmem>>, vector<1x128xf32>
      %cst_13 = arith.constant dense<0.000000e+00> : vector<128xf32>
      %31 = vector.multi_reduction <add>, %23, %cst_13 [0] : vector<16x128xf32> to vector<128xf32>
      %32 = vector.shape_cast %31 : vector<128xf32> to vector<1x128xf32>
      %33 = arith.addf %30, %32 : vector<1x128xf32>
      %c0_14 = arith.constant 0 : index
      %c0_15 = arith.constant 0 : index
      %34 = vector.load %arg5[%c0_14, %c0_15] : memref<1x128xf32, #tpu.memory_space<vmem>>, vector<1x128xf32>
      tpu.vector_store %arg5[%c0_14, %c0_15], %33 {strides = array<i32>} : memref<1x128xf32, #tpu.memory_space<vmem>>, vector<1x128xf32>,
    } else {
    }
    %c0_i32_9 = arith.constant 0 : i32
    %27 = arith.cmpi eq, %arg1, %c0_i32_9 : i32
    %28 = arith.extui %27 : i1 to i32
    %c0_i32_10 = arith.constant 0 : i32
    %29 = arith.cmpi ne, %28, %c0_i32_10 : i32
    scf.if %29 {
      %c0_11 = arith.constant 0 : index
      %c0_12 = arith.constant 0 : index
      %30 = vector.load %arg5[%c0_11, %c0_12] : memref<1x128xf32, #tpu.memory_space<vmem>>, vector<1x128xf32>
      %31 = vector.shape_cast %30 : vector<1x128xf32> to vector<1x1x128xf32>
      %cst_13 = arith.constant dense<0.000000e+00> : vector<1xf32>
      %32 = vector.multi_reduction <add>, %31, %cst_13 [1, 2] : vector<1x1x128xf32> to vector<1xf32>
      %33 = vector.shape_cast %32 : vector<1xf32> to vector<1x1x1xf32>
      %34 = vector.extract %33[0, 0, 0] : f32 from vector<1x1x1xf32>
      %c0_14 = arith.constant 0 : index
      %c0_15 = arith.constant 0 : index
      %35 = memref.load %arg4[%c0_14, %c0_15] : memref<1x1xf32, #tpu.memory_space<smem>>
      memref.store %34, %arg4[%c0_14, %c0_15] : memref<1x1xf32, #tpu.memory_space<smem>>
    } else {
    }
    return
  }
  func.func @transform_0(%arg0: i32, %arg1: i32) -> (i32, i32) {
    %c1_i32 = arith.constant 1 : i32
    %0 = arith.muli %arg0, %c1_i32 : i32
    %1 = arith.addi %0, %arg1 : i32
    %c0_i32 = arith.constant 0 : i32
    %2 = arith.minsi %1, %c0_i32 : i32
    %c0_i32_0 = arith.constant 0 : i32
    %c0_i32_1 = arith.constant 0 : i32
    return %2, %c0_i32_0 : i32, i32
  }
  func.func @transform_1(%arg0: i32, %arg1: i32) -> (i32, i32) {
    %c1_i32 = arith.constant 1 : i32
    %0 = arith.muli %arg0, %c1_i32 : i32
    %1 = arith.addi %0, %arg1 : i32
    %c0_i32 = arith.constant 0 : i32
    %2 = arith.minsi %1, %c0_i32 : i32
    %c0_i32_0 = arith.constant 0 : i32
    %c0_i32_1 = arith.constant 0 : i32
    return %2, %c0_i32_0 : i32, i32
  }
  func.func @transform_2(%arg0: i32, %arg1: i32) -> (i32, i32) {
    %c0_i32 = arith.constant 0 : i32
    %c0_i32_0 = arith.constant 0 : i32
    return %arg0, %c0_i32 : i32, i32
  }
}

</mosaic_0001>

<llo_original>
// kernel: tpu_custom_call.1
$region0: #{tpu_custom_call.1}
  #allocation0 [shape = 'u32[]', space=smem, size = 0x4, offset = 0x4, fixed_abs, tag = 'smem constant byte address 0x4 - core index']
  #allocation1 [shape = 'u32[72,128]{1,0:T(1,128)}', space=vmem, size = 0x9000, scoped, tag = 'internal scratch']
  #allocation2 [shape = 'f32[1,128]{1,0:T(1,128)}', space=vmem, size = 0x200, scoped, tag = 'scratch operand']
  %s0 = inlined_call_operand.hbm [shape: f32[16,128], index: 0, kind: input, shape index: {}]
  %s1 = inlined_call_operand.hbm [shape: f32[16,128], index: 1, kind: input, shape index: {}]
  %s2 = inlined_call_operand.hbm [shape: f32[1,1], index: 2, kind: output, shape index: {}]
  %s3 = sld [smem:[#allocation0]]
  $region38: #{tpu_custom_call.1} parent=0
    _
  %s5 = ssub.s32 1, %s3
  %s6 = scalar_select 0, %s5, %s3
  $region1: #{tpu_custom_call.1} parent=0
    #allocation3 [shape = 'u8[8192]{0}', space=vmem, size = 0x2000, scoped, tag = 'input window, operand 0, single buffered']
    #allocation4 [shape = 's32[1]{0}', space=sflag, size = 0x4, scoped, tag = 'scoped memory for tpu_custom_call.1']
    #allocation5 [shape = 's32[1]{0}', space=sflag, size = 0x4, scoped, tag = 'scoped memory for tpu_custom_call.1']
    #allocation6 [shape = 'u8[8192]{0}', space=vmem, size = 0x2000, scoped, tag = 'input window, operand 1, single buffered']
    #allocation7 [shape = 's32[1]{0}', space=sflag, size = 0x4, scoped, tag = 'scoped memory for tpu_custom_call.1']
    #allocation8 [shape = 'u8[512]{0}', space=smem, size = 0x200, scoped, tag = 'output window, operand 0, single buffered']
    %7 = vsyncpa [#allocation4], 0
    %8 = vsyncpa [#allocation7], 0
    %9 = vsyncpa [#allocation5], 0
    // Predicated region
    $region2: #{tpu_custom_call.1} parent=1 // pred_check
      _
    $region3: #{tpu_custom_call.1} parent=1 // pred_check_branch
      %11 = sbr.rel (0) target = $region5
    $region4: #{tpu_custom_call.1} parent=1 // pred_region
      %s12 = sadd.s32 0, 0
      %p13 = scmp.lt.s32.totalorder %s12, 0
      %s14 = scalar_select %p13, %s12, 0
      %s15 = smul.u32 2, %s14
      %17 = vsyncadd [#allocation4], 0
      %s18 = smul.addr %s15, 8
      %s19 = scalar_lea.hbm %s0, %s18
      %s20 = sshll.u32 %s19, 4
      %s21 = int_to_ptr.hbm [resolvable:$true] %s20
      %s22 = sshll.u32 [#allocation3], 4
      %s23 = int_to_ptr.vmem [resolvable:$true] %s22
      %28 = dma.hbm_to_vmem [thread:$0]  %s21, 256, %s23, [#allocation4], 128, 128, 8
    $region5: #{tpu_custom_call.1} parent=1 // pred_fallthru
      _
    // Predicated region
    $region6: #{tpu_custom_call.1} parent=1 // pred_check
      _
    $region7: #{tpu_custom_call.1} parent=1 // pred_check_branch
      %30 = sbr.rel (0) target = $region9
    $region8: #{tpu_custom_call.1} parent=1 // pred_region
      %s31 = sadd.s32 0, 0
      %p32 = scmp.lt.s32.totalorder %s31, 0
      %s33 = scalar_select %p32, %s31, 0
      %s34 = smul.u32 2, %s33
      %36 = vsyncadd [#allocation7], 0
      %s37 = smul.addr %s34, 8
      %s38 = scalar_lea.hbm %s1, %s37
      %s39 = sshll.u32 %s38, 4
      %s40 = int_to_ptr.hbm [resolvable:$true] %s39
      %s41 = sshll.u32 [#allocation6], 4
      %s42 = int_to_ptr.vmem [resolvable:$true] %s41
      %47 = dma.hbm_to_vmem [thread:$0]  %s40, 256, %s42, [#allocation7], 128, 128, 8
    $region9: #{tpu_custom_call.1} parent=1 // pred_fallthru
      _
    // Predicated region
    $region10: #{tpu_custom_call.1} parent=1 // pred_check
      _
    $region11: #{tpu_custom_call.1} parent=1 // pred_check_branch
      %49 = sbr.rel (0) target = $region13
    $region12: #{tpu_custom_call.1} parent=1 // pred_region
      %51 = dma.done [#allocation4], 256
    $region13: #{tpu_custom_call.1} parent=1 // pred_fallthru
      _
    // Predicated region
    $region14: #{tpu_custom_call.1} parent=1 // pred_check
      _
    $region15: #{tpu_custom_call.1} parent=1 // pred_check_branch
      %53 = sbr.rel (0) target = $region17
    $region16: #{tpu_custom_call.1} parent=1 // pred_region
      %55 = dma.done [#allocation7], 256
    $region17: #{tpu_custom_call.1} parent=1 // pred_fallthru
      _
    %s56 = sadd.s32 0, 0
    %p57 = scmp.lt.s32.totalorder %s56, 0
    %s58 = scalar_select %p57, %s56, 0
    %s59 = smul.u32 2, %s58
    %s60 = sadd.s32 0, 0
    %p61 = scmp.lt.s32.totalorder %s60, 0
    %s62 = scalar_select %p61, %s60, 0
    %s63 = smul.u32 2, %s62
    %s64 = sadd.s32 0, 0
    %p65 = scmp.eq.s32.totalorder 0, 0
    // Predicated region
    $region18: #{tpu_custom_call.1} parent=1 // pred_check
      %p66 = pneg %p65
    $region19: #{tpu_custom_call.1} parent=1 // pred_check_branch
      %68 = sbr.rel (%p66) target = $region21
    $region20: #{tpu_custom_call.1} parent=1 // pred_region
      %69 = vst [vmem:[#allocation2] sm:$0x1] 0.0
    $region21: #{tpu_custom_call.1} parent=1 // pred_fallthru
      _
    %v70 = vld [vmem:[#allocation3] sm:$0xff]
    %v71 = vld [vmem:[#allocation3 + $0x8] sm:$0xff]
    %v72 = vld [vmem:[#allocation6] sm:$0xff]
    %v73 = vld [vmem:[#allocation6 + $0x8] sm:$0xff]
    %v74 = vmax.f32 %v70, 0.0
    %v75 = vmax.f32 %v71, 0.0
    %v76 = vmul.f32 %v70, %v72
    %v77 = vmul.f32 %v71, %v73
    %v78 = vsub.f32 %v74, %v76
    %v79 = vsub.f32 %v75, %v77
    %v80 = vand.u32 2147483647, %v70
    %v81 = vand.u32 2147483647, %v71
    %v82 = vsub.f32 0.0, %v80
    %v83 = vsub.f32 0.0, %v81
    %v84 = vmul.f32 %v82, 1.442695
    %v85 = vpow.pop %v84
    %v86 = vmul.f32 %v83, 1.442695
    %v87 = vpow.pop %v86
    %v88 = vadd.f32 %v85, 1.0
    %v89 = vlog2.pop %v88
    %v90 = vmul.f32 %v89, 0.6931472
    %v91 = vmul.f32 -0.5, %v85
    %v92 = vadd.f32 %v91, 1.0
    %v93 = vmul.f32 %v92, %v85
    %v94 = vand.u32 2147483647, %v85
    %vm95 = vcmp.lt.f32.partialorder %v94, 0.0004427343
    %v96 = vsel %vm95, %v93, %v90
    %v97 = vadd.f32 %v87, 1.0
    %v98 = vlog2.pop %v97
    %v99 = vmul.f32 %v98, 0.6931472
    %v100 = vmul.f32 -0.5, %v87
    %v101 = vadd.f32 %v100, 1.0
    %v102 = vmul.f32 %v101, %v87
    %v103 = vand.u32 2147483647, %v87
    %vm104 = vcmp.lt.f32.partialorder %v103, 0.0004427343
    %v105 = vsel %vm104, %v102, %v99
    %v106 = vadd.f32 %v78, %v96
    %v107 = vadd.f32 %v79, %v105
    %v108 = vsub.f32 0.0, %v106
    %v109 = vsub.f32 0.0, %v107
    %v110 = vmul.f32 %v108, 1.442695
    %v111 = vpow.pop %v110
    %v112 = vmul.f32 %v109, 1.442695
    %v113 = vpow.pop %v112
    %v114 = vsub.f32 1.0, %v111
    %v115 = vsub.f32 1.0, %v113
    %v116 = vmul.f32 %v114, %v114
    %v117 = vmul.f32 %v115, %v115
    %v118 = vmul.f32 %v116, %v106
    %v119 = vmul.f32 %v117, %v107
    %p120 = scmp.lt.s32.totalorder %s64, 1
    // Predicated region
    $region22: #{tpu_custom_call.1} parent=1 // pred_check
      %p121 = pneg %p120
    $region23: #{tpu_custom_call.1} parent=1 // pred_check_branch
      %123 = sbr.rel (%p121) target = $region25
    $region24: #{tpu_custom_call.1} parent=1 // pred_region
      %v124 = vld [vmem:[#allocation2] sm:$0x1]
      %v125 = vadd.f32 %v118, %v119
      %v126 = vrot.slane %v125, 4
      %v127 = vadd.f32 %v125, %v126
      %v128 = vrot.slane %v127, 2
      %v129 = vadd.f32 %v127, %v128
      %v130 = vrot.slane %v129, 1
      %v131 = vadd.f32 %v129, %v130
      %v132 = vadd.f32 %v124, %v131
      %133 = vst [vmem:[#allocation2] sm:$0x1] %v132
    $region25: #{tpu_custom_call.1} parent=1 // pred_fallthru
      _
    // Predicated region
    $region26: #{tpu_custom_call.1} parent=1 // pred_check
      %p134 = pneg %p65
    $region27: #{tpu_custom_call.1} parent=1 // pred_check_branch
      %136 = sbr.rel (%p134) target = $region29
    $region28: #{tpu_custom_call.1} parent=1 // pred_region
      %v137 = vld [vmem:[#allocation2] sm:$0x1]
      %vm138 = vcmask 1040384
      %v139 = vsel %vm138, %v137, 0.0
      %140 = vadd.xlane.f32.xlu0 %v139
      %v141 = vpop.xlane.xlu0 %140
      %v142 = vrot.slane %v141, 4
      %v143 = vadd.f32 %v141, %v142
      %v144 = vrot.slane %v143, 2
      %v145 = vadd.f32 %v143, %v144
      %v146 = vrot.slane %v145, 1
      %v147 = vadd.f32 %v145, %v146
      %s148 = vtos %v147
      %s149 = scalar_lea.smem [#allocation8], 0
      %150 = sst [smem:[%s149]] %s148
    $region29: #{tpu_custom_call.1} parent=1 // pred_fallthru
      _
    // Predicated region
    $region30: #{tpu_custom_call.1} parent=1 // pred_check
      _
    $region31: #{tpu_custom_call.1} parent=1 // pred_check_branch
      %152 = sbr.rel (0) target = $region33
    $region32: #{tpu_custom_call.1} parent=1 // pred_region
      %154 = vsyncadd [#allocation5], 0
      %s156 = sshll.u32 %s2, 4
      %s157 = int_to_ptr.hbm [resolvable:$true] %s156
      %159 = dma.smem_to_hbm [#allocation8], 16, %s157, [#allocation5]
    $region33: #{tpu_custom_call.1} parent=1 // pred_fallthru
      _
    // Predicated region
    $region34: #{tpu_custom_call.1} parent=1 // pred_check
      _
    $region35: #{tpu_custom_call.1} parent=1 // pred_check_branch
      %161 = sbr.rel (0) target = $region37
    $region36: #{tpu_custom_call.1} parent=1 // pred_region
      %163 = dma.done [#allocation5], 16
    $region37: #{tpu_custom_call.1} parent=1 // pred_fallthru
      _
    %164 = sfence
    %165 = vsyncpa [#allocation4], 1
    %166 = vsyncpa [#allocation7], 1
    %167 = vsyncpa [#allocation5], 1

</llo_original>
